<compile_context>
chip_gen: v6e
topology: v6e:2x2x1
jax: 0.10.0
libtpu: 0.0.40
codegen_flags: <defaults>
</compile_context>

<pallas_src>
import functools

import jax
import jax.numpy as jnp
from jax.experimental import pallas as pl
from jax.experimental.pallas import tpu as pltpu


def _cdiv(a, b):
    return (a + b - 1) // b


def _round_up(a, b):
    return _cdiv(a, b) * b


def _dice_sums_kernel(p_ref, t_ref, acc_ref, *,
                      is_sigmoid, need_mask, length, kh, c_blk):
    """Accumulate per-row sums of (s*t, s, t) over spatial chunks.

    s = tanh(x/2) when is_sigmoid (the sigmoid affine is folded into the
    epilogue), else s = x.  Grid = (spatial half, row block, chunk-in-half).
    """
    h = pl.program_id(0)
    k = pl.program_id(2)

    x = p_ref[...].astype(jnp.float32)            # (rb, c_blk, 128)
    t = t_ref[...].astype(jnp.float32)
    if is_sigmoid:
        s = jnp.tanh(0.5 * x)                     # single EUP push / element
    else:
        s = x

    if need_mask:
        rb = p_ref.shape[0]
        sub = jax.lax.broadcasted_iota(jnp.int32, (rb, c_blk, 128), 1)
        lane = jax.lax.broadcasted_iota(jnp.int32, (rb, c_blk, 128), 2)
        base = (h * kh + k) * (c_blk * 128)       # global offset of this block
        valid = (sub * 128 + lane) < (length - base)
        s = jnp.where(valid, s, 0.0)
        t = jnp.where(valid, t, 0.0)

    st = jnp.sum(s * t, axis=1)                   # (rb, 128) lane-dense partials
    ss = jnp.sum(s, axis=1)
    tt = jnp.sum(t, axis=1)

    @pl.when(k == 0)
    def _():                                      # first chunk: plain store
        acc_ref[0] = st
        acc_ref[1] = ss
        acc_ref[2] = tt

    @pl.when(k != 0)
    def _():                                      # later chunks: accumulate
        acc_ref[0] += st
        acc_ref[1] += ss
        acc_ref[2] += tt


def _dice_sums(p3, t3, *, row_block, c_blk, n_rb, kh,
               is_sigmoid, need_mask, length):
    rows_out = n_rb * row_block
    n128 = p3.shape[1]
    n_sp = _cdiv(n128, c_blk)

    def in_map(h, i, k):
        # Clamp so over-provisioned blocks of the second half stay in bounds;
        # the in-kernel mask zeroes their contribution.
        return (i, jnp.minimum(h * kh + k, n_sp - 1), 0)

    in_spec = pl.BlockSpec((row_block, c_blk, 128), in_map)
    out_spec = pl.BlockSpec((None, 3, row_block, 128),
                            lambda h, i, k: (h, 0, i, 0))

    kernel = functools.partial(
        _dice_sums_kernel, is_sigmoid=is_sigmoid, need_mask=need_mask,
        length=length, kh=kh, c_blk=c_blk)

    return pl.pallas_call(
        kernel,
        out_shape=jax.ShapeDtypeStruct((2, 3, rows_out, 128), jnp.float32),
        grid_spec=pltpu.PrefetchScalarGridSpec(
            num_scalar_prefetch=0,
            grid=(2, n_rb, kh),
            in_specs=[in_spec, in_spec],
            out_specs=out_spec,
        ),
        compiler_params=pltpu.CompilerParams(
            dimension_semantics=("parallel", "parallel", "arbitrary"),
            vmem_limit_bytes=32 * 1024 * 1024,
        ),
    )(p3, t3)


def dice_loss(predict, target, *, num_classes=4, smooth=1e-05, weight=None,
              ignore_index=None, is_sigmoid=True):
    """JAX/Pallas equivalent of DiceLoss.forward (smooth in denominator only)."""
    assert predict.shape[0] == target.shape[0], "batch size mismatch"
    N, C = predict.shape[0], predict.shape[1]
    assert C == num_classes

    rows = N * C
    spatial = 1
    for d in predict.shape[2:]:
        spatial *= d

    # Stream native dtypes (no host cast); target may be int8/uint8/bf16/f32.
    p2 = predict.reshape(rows, spatial)
    t2 = target.reshape(rows, spatial)

    # Lane alignment only (multiple of 128).  The ragged chunk tail is masked
    # in-kernel, so we never pad to chunk granularity / re-materialize inputs.
    l128 = _round_up(spatial, 128)
    if l128 != spatial:
        p2 = jnp.pad(p2, ((0, 0), (0, l128 - spatial)))
        t2 = jnp.pad(t2, ((0, 0), (0, l128 - spatial)))
    n128 = l128 // 128
    p3 = p2.reshape(rows, n128, 128)              # free reshape when no pad
    t3 = t2.reshape(rows, n128, 128)

    # Row blocking: keep the (row_block, 128) accumulator tile legal & small.
    if rows <= 64:
        row_block, n_rb = rows, 1
    else:
        row_block = 64                            # divisible by 8
        n_rb = _cdiv(rows, row_block)             # partial last block allowed;
                                                  # garbage rows sliced off below

    # Spatial chunking: ~1 MiB input blocks and >= ~8 chunks per row so the
    # DMA pipeline reaches steady state well under the VMEM budget.
    p_item = jnp.dtype(predict.dtype).itemsize
    min_item = max(1, min(p_item, jnp.dtype(target.dtype).itemsize))
    sub_mult = max(8, 32 // min_item)             # 8 (f32) / 16 (bf16) / 32 (i8)
    c_bytes = max(1, (1 << 20) // (row_block * 128 * p_item))
    c_steps = max(1, _cdiv(n128, 8))
    c_blk = min(c_bytes, c_steps)
    if c_blk >= n128:
        c_blk = n128
    else:
        c_blk = max(sub_mult, (c_blk // sub_mult) * sub_mult)
        c_blk = min(c_blk, n128)

    n_sp = _cdiv(n128, c_blk)
    kh = _cdiv(n_sp, 2)                           # chunks per spatial half
    need_mask = (2 * kh * c_blk * 128) != spatial

    acc = _dice_sums(p3, t3, row_block=row_block, c_blk=c_blk, n_rb=n_rb,
                     kh=kh, is_sigmoid=is_sigmoid, need_mask=need_mask,
                     length=spatial)

    sums = jnp.sum(acc, axis=(0, 3))[:, :rows]    # (3, rows): halves + lanes
    s_st, s_s, s_t = sums[0], sums[1], sums[2]
    if is_sigmoid:
        # p = 0.5 * (tanh(x/2) + 1); affine folded out of the kernel.
        inter = 0.5 * (s_st + s_t)
        p_sum = 0.5 * (s_s + float(spatial))
    else:
        inter = s_st
        p_sum = s_s
    union = p_sum + s_t

    # BinaryDiceLoss per (batch, class): 1 - 2*I / (U + smooth)
    # (smooth in the denominator only, matching the reference module).
    dice_nc = (1.0 - 2.0 * inter / (union + smooth)).reshape(N, C)
    per_class = jnp.mean(dice_nc, axis=0)         # mean over batch, per class

    if weight is not None:
        per_class = per_class * jnp.asarray(weight, dtype=per_class.dtype)

    # ignore_index kept static (Python int): average over the kept classes,
    # matching `sum(total_loss) / len(total_loss)` in the reference.
    kept = [i for i in range(C) if i != ignore_index]
    per_class = per_class[jnp.asarray(kept)]
    return jnp.mean(per_class)


if __name__ == "__main__":
    key = jax.random.PRNGKey(0)
    k1, k2 = jax.random.split(key)

    N, C, H, W = 2, 4, 16, 16
    predict = jax.random.normal(k1, (N, C, H, W), dtype=jnp.float32)
    target = (jax.random.uniform(k2, (N, C, H, W)) > 0.5).astype(jnp.float32)

    loss = dice_loss(predict, target, num_classes=C, smooth=1e-05,
                     weight=None, ignore_index=None, is_sigmoid=True)
    loss = jax.block_until_ready(loss)

    # Pure-JAX reference (same math as the PyTorch module).
    p = jax.nn.sigmoid(predict).reshape(N * C, -1)
    t = target.reshape(N * C, -1)
    inter_ref = jnp.sum(p * t, axis=1)
    union_ref = jnp.sum(p, axis=1) + jnp.sum(t, axis=1)
    dice_ref = (1.0 - 2.0 * inter_ref / (union_ref + 1e-05)).reshape(N, C)
    ref = jnp.mean(jnp.mean(dice_ref, axis=0))
    assert jnp.allclose(loss, ref, atol=1e-4, rtol=1e-4), (loss, ref)

    print("KERNEL_OK")
</pallas_src>

<mosaic_0001>
module attributes {stable_mosaic.version = 11 : i64} {
  func.func @_dice_sums_kernel(%arg0: i32, %arg1: i32, %arg2: i32, %arg3: memref<8x2x128xf32, #tpu.memory_space<vmem>>, %arg4: memref<8x2x128xf32, #tpu.memory_space<vmem>>, %arg5: memref<1x3x8x128xf32, #tpu.memory_space<vmem>>) attributes {dimension_semantics = [#tpu.dimension_semantics<parallel>, #tpu.dimension_semantics<parallel>, #tpu.dimension_semantics<arbitrary>], iteration_bounds = array<i64: 2, 1, 1>, scalar_prefetch = 0 : i64, scratch_operands = 0 : i64, tpu.core_type = #tpu.core_type<tc>, window_params = [{transform_indices = @transform_0, window_bounds = array<i64: 8, 2, 128>}, {transform_indices = @transform_1, window_bounds = array<i64: 8, 2, 128>}, {transform_indices = @transform_2, window_bounds = array<i64: 1, 3, 8, 128>}]} {
    %c0 = arith.constant 0 : index
    %c0_0 = arith.constant 0 : index
    %c0_1 = arith.constant 0 : index
    %0 = vector.load %arg3[%c0, %c0_0, %c0_1] : memref<8x2x128xf32, #tpu.memory_space<vmem>>, vector<8x2x128xf32>
    %c0_2 = arith.constant 0 : index
    %c0_3 = arith.constant 0 : index
    %c0_4 = arith.constant 0 : index
    %1 = vector.load %arg4[%c0_2, %c0_3, %c0_4] : memref<8x2x128xf32, #tpu.memory_space<vmem>>, vector<8x2x128xf32>
    %cst = arith.constant 5.000000e-01 : f32
    %2 = vector.broadcast %cst : f32 to vector<8x2x128xf32>
    %3 = arith.mulf %2, %0 : vector<8x2x128xf32>
    %4 = math.tanh %3 : vector<8x2x128xf32>
    %5 = tpu.iota {dimensions = array<i32: 1>} : vector<8x2x128xi32>
    %6 = tpu.iota {dimensions = array<i32: 2>} : vector<8x2x128xi32>
    %c1_i32 = arith.constant 1 : i32
    %7 = arith.muli %arg0, %c1_i32 : i32
    %8 = arith.addi %7, %arg2 : i32
    %c256_i32 = arith.constant 256 : i32
    %9 = arith.muli %8, %c256_i32 : i32
    %c128_i32 = arith.constant 128 : i32
    %10 = vector.broadcast %c128_i32 : i32 to vector<8x2x128xi32>
    %11 = arith.muli %5, %10 : vector<8x2x128xi32>
    %12 = arith.addi %11, %6 : vector<8x2x128xi32>
    %c256_i32_5 = arith.constant 256 : i32
    %13 = arith.subi %c256_i32_5, %9 : i32
    %14 = vector.broadcast %13 : i32 to vector<8x2x128xi32>
    %15 = arith.cmpi slt, %12, %14 : vector<8x2x128xi32>
    %cst_6 = arith.constant 0.000000e+00 : f32
    %16 = vector.broadcast %cst_6 : f32 to vector<8x2x128xf32>
    %17 = arith.select %15, %4, %16 : vector<8x2x128xi1>, vector<8x2x128xf32>
    %cst_7 = arith.constant 0.000000e+00 : f32
    %18 = vector.broadcast %cst_7 : f32 to vector<8x2x128xf32>
    %19 = arith.select %15, %1, %18 : vector<8x2x128xi1>, vector<8x2x128xf32>
    %20 = arith.mulf %17, %19 : vector<8x2x128xf32>
    %cst_8 = arith.constant dense<0.000000e+00> : vector<8x128xf32>
    %21 = vector.multi_reduction <add>, %20, %cst_8 [1] : vector<8x2x128xf32> to vector<8x128xf32>
    %cst_9 = arith.constant dense<0.000000e+00> : vector<8x128xf32>
    %22 = vector.multi_reduction <add>, %17, %cst_9 [1] : vector<8x2x128xf32> to vector<8x128xf32>
    %cst_10 = arith.constant dense<0.000000e+00> : vector<8x128xf32>
    %23 = vector.multi_reduction <add>, %19, %cst_10 [1] : vector<8x2x128xf32> to vector<8x128xf32>
    %c0_i32 = arith.constant 0 : i32
    %24 = arith.cmpi eq, %arg2, %c0_i32 : i32
    %25 = arith.extui %24 : i1 to i32
    %c0_i32_11 = arith.constant 0 : i32
    %26 = arith.cmpi ne, %25, %c0_i32_11 : i32
    scf.if %26 {
      %c0_14 = arith.constant 0 : index
      %c0_15 = arith.constant 0 : index
      %c0_16 = arith.constant 0 : index
      %c0_17 = arith.constant 0 : index
      %30 = vector.load %arg5[%c0_14, %c0_15, %c0_16, %c0_17] : memref<1x3x8x128xf32, #tpu.memory_space<vmem>>, vector<1x1x8x128xf32>
      %31 = vector.shape_cast %30 : vector<1x1x8x128xf32> to vector<8x128xf32>
      %32 = vector.shape_cast %21 : vector<8x128xf32> to vector<1x1x8x128xf32>
      tpu.vector_store %arg5[%c0_14, %c0_15, %c0_16, %c0_17], %32 {strides = array<i32>} : memref<1x3x8x128xf32, #tpu.memory_space<vmem>>, vector<1x1x8x128xf32>,
      %c0_18 = arith.constant 0 : index
      %c1 = arith.constant 1 : index
      %c0_19 = arith.constant 0 : index
      %c0_20 = arith.constant 0 : index
      %33 = vector.load %arg5[%c0_18, %c1, %c0_19, %c0_20] : memref<1x3x8x128xf32, #tpu.memory_space<vmem>>, vector<1x1x8x128xf32>
      %34 = vector.shape_cast %33 : vector<1x1x8x128xf32> to vector<8x128xf32>
      %35 = vector.shape_cast %22 : vector<8x128xf32> to vector<1x1x8x128xf32>
      tpu.vector_store %arg5[%c0_18, %c1, %c0_19, %c0_20], %35 {strides = array<i32>} : memref<1x3x8x128xf32, #tpu.memory_space<vmem>>, vector<1x1x8x128xf32>,
      %c0_21 = arith.constant 0 : index
      %c2 = arith.constant 2 : index
      %c0_22 = arith.constant 0 : index
      %c0_23 = arith.constant 0 : index
      %36 = vector.load %arg5[%c0_21, %c2, %c0_22, %c0_23] : memref<1x3x8x128xf32, #tpu.memory_space<vmem>>, vector<1x1x8x128xf32>
      %37 = vector.shape_cast %36 : vector<1x1x8x128xf32> to vector<8x128xf32>
      %38 = vector.shape_cast %23 : vector<8x128xf32> to vector<1x1x8x128xf32>
      tpu.vector_store %arg5[%c0_21, %c2, %c0_22, %c0_23], %38 {strides = array<i32>} : memref<1x3x8x128xf32, #tpu.memory_space<vmem>>, vector<1x1x8x128xf32>,
    } else {
    }
    %c0_i32_12 = arith.constant 0 : i32
    %27 = arith.cmpi ne, %arg2, %c0_i32_12 : i32
    %28 = arith.extui %27 : i1 to i32
    %c0_i32_13 = arith.constant 0 : i32
    %29 = arith.cmpi ne, %28, %c0_i32_13 : i32
    scf.if %29 {
      %c0_14 = arith.constant 0 : index
      %c0_15 = arith.constant 0 : index
      %c0_16 = arith.constant 0 : index
      %c0_17 = arith.constant 0 : index
      %30 = vector.load %arg5[%c0_14, %c0_15, %c0_16, %c0_17] : memref<1x3x8x128xf32, #tpu.memory_space<vmem>>, vector<1x1x8x128xf32>
      %31 = vector.shape_cast %30 : vector<1x1x8x128xf32> to vector<8x128xf32>
      %32 = arith.addf %31, %21 : vector<8x128xf32>
      %c0_18 = arith.constant 0 : index
      %c0_19 = arith.constant 0 : index
      %c0_20 = arith.constant 0 : index
      %c0_21 = arith.constant 0 : index
      %33 = vector.load %arg5[%c0_18, %c0_19, %c0_20, %c0_21] : memref<1x3x8x128xf32, #tpu.memory_space<vmem>>, vector<1x1x8x128xf32>
      %34 = vector.shape_cast %33 : vector<1x1x8x128xf32> to vector<8x128xf32>
      %35 = vector.shape_cast %32 : vector<8x128xf32> to vector<1x1x8x128xf32>
      tpu.vector_store %arg5[%c0_18, %c0_19, %c0_20, %c0_21], %35 {strides = array<i32>} : memref<1x3x8x128xf32, #tpu.memory_space<vmem>>, vector<1x1x8x128xf32>,
      %c0_22 = arith.constant 0 : index
      %c1 = arith.constant 1 : index
      %c0_23 = arith.constant 0 : index
      %c0_24 = arith.constant 0 : index
      %36 = vector.load %arg5[%c0_22, %c1, %c0_23, %c0_24] : memref<1x3x8x128xf32, #tpu.memory_space<vmem>>, vector<1x1x8x128xf32>
      %37 = vector.shape_cast %36 : vector<1x1x8x128xf32> to vector<8x128xf32>
      %38 = arith.addf %37, %22 : vector<8x128xf32>
      %c0_25 = arith.constant 0 : index
      %c1_26 = arith.constant 1 : index
      %c0_27 = arith.constant 0 : index
      %c0_28 = arith.constant 0 : index
      %39 = vector.load %arg5[%c0_25, %c1_26, %c0_27, %c0_28] : memref<1x3x8x128xf32, #tpu.memory_space<vmem>>, vector<1x1x8x128xf32>
      %40 = vector.shape_cast %39 : vector<1x1x8x128xf32> to vector<8x128xf32>
      %41 = vector.shape_cast %38 : vector<8x128xf32> to vector<1x1x8x128xf32>
      tpu.vector_store %arg5[%c0_25, %c1_26, %c0_27, %c0_28], %41 {strides = array<i32>} : memref<1x3x8x128xf32, #tpu.memory_space<vmem>>, vector<1x1x8x128xf32>,
      %c0_29 = arith.constant 0 : index
      %c2 = arith.constant 2 : index
      %c0_30 = arith.constant 0 : index
      %c0_31 = arith.constant 0 : index
      %42 = vector.load %arg5[%c0_29, %c2, %c0_30, %c0_31] : memref<1x3x8x128xf32, #tpu.memory_space<vmem>>, vector<1x1x8x128xf32>
      %43 = vector.shape_cast %42 : vector<1x1x8x128xf32> to vector<8x128xf32>
      %44 = arith.addf %43, %23 : vector<8x128xf32>
      %c0_32 = arith.constant 0 : index
      %c2_33 = arith.constant 2 : index
      %c0_34 = arith.constant 0 : index
      %c0_35 = arith.constant 0 : index
      %45 = vector.load %arg5[%c0_32, %c2_33, %c0_34, %c0_35] : memref<1x3x8x128xf32, #tpu.memory_space<vmem>>, vector<1x1x8x128xf32>
      %46 = vector.shape_cast %45 : vector<1x1x8x128xf32> to vector<8x128xf32>
      %47 = vector.shape_cast %44 : vector<8x128xf32> to vector<1x1x8x128xf32>
      tpu.vector_store %arg5[%c0_32, %c2_33, %c0_34, %c0_35], %47 {strides = array<i32>} : memref<1x3x8x128xf32, #tpu.memory_space<vmem>>, vector<1x1x8x128xf32>,
    } else {
    }
    return
  }
  func.func @transform_0(%arg0: i32, %arg1: i32, %arg2: i32) -> (i32, i32, i32) {
    %c1_i32 = arith.constant 1 : i32
    %0 = arith.muli %arg0, %c1_i32 : i32
    %1 = arith.addi %0, %arg2 : i32
    %c0_i32 = arith.constant 0 : i32
    %2 = arith.minsi %1, %c0_i32 : i32
    %c0_i32_0 = arith.constant 0 : i32
    %c0_i32_1 = arith.constant 0 : i32
    return %arg1, %2, %c0_i32_0 : i32, i32, i32
  }
  func.func @transform_1(%arg0: i32, %arg1: i32, %arg2: i32) -> (i32, i32, i32) {
    %c1_i32 = arith.constant 1 : i32
    %0 = arith.muli %arg0, %c1_i32 : i32
    %1 = arith.addi %0, %arg2 : i32
    %c0_i32 = arith.constant 0 : i32
    %2 = arith.minsi %1, %c0_i32 : i32
    %c0_i32_0 = arith.constant 0 : i32
    %c0_i32_1 = arith.constant 0 : i32
    return %arg1, %2, %c0_i32_0 : i32, i32, i32
  }
  func.func @transform_2(%arg0: i32, %arg1: i32, %arg2: i32) -> (i32, i32, i32, i32) {
    %c0_i32 = arith.constant 0 : i32
    %c0_i32_0 = arith.constant 0 : i32
    %c0_i32_1 = arith.constant 0 : i32
    return %arg0, %c0_i32, %arg1, %c0_i32_0 : i32, i32, i32, i32
  }
}

</mosaic_0001>

<llo_original>
// kernel: tpu_custom_call.1
$region0: #{tpu_custom_call.1}
  #allocation0 [shape = 'u32[]', space=smem, size = 0x4, offset = 0x4, fixed_abs, tag = 'smem constant byte address 0x4 - core index']
  #allocation1 [shape = 'u32[144,128]{1,0:T(1,128)}', space=vmem, size = 0x12000, scoped, tag = 'internal scratch']
  %s0 = inlined_call_operand.hbm [shape: f32[8,2,128], index: 0, kind: input, shape index: {}]
  %s1 = inlined_call_operand.hbm [shape: f32[8,2,128], index: 1, kind: input, shape index: {}]
  %s2 = inlined_call_operand.hbm [shape: f32[2,3,8,128], index: 2, kind: output, shape index: {}]
  %s3 = sld [smem:[#allocation0]]
  $region57: #{tpu_custom_call.1} parent=0
    _
  %s5 = ssub.s32 1, %s3
  %s6 = scalar_select 0, %s5, %s3
  $region1: #{tpu_custom_call.1} parent=0
    #allocation2 [shape = 'u8[16384]{0}', space=vmem, size = 0x4000, scoped, tag = 'input window, operand 0']
    #allocation3 [shape = 's32[2]{0}', space=sflag, size = 0x8, scoped, tag = 'scoped memory for tpu_custom_call.1']
    #allocation4 [shape = 's32[2]{0}', space=sflag, size = 0x8, scoped, tag = 'scoped memory for tpu_custom_call.1']
    #allocation5 [shape = 'u8[16384]{0}', space=vmem, size = 0x4000, scoped, tag = 'input window, operand 1']
    #allocation6 [shape = 's32[2]{0}', space=sflag, size = 0x8, scoped, tag = 'scoped memory for tpu_custom_call.1']
    #allocation7 [shape = 'u8[24576]{0}', space=vmem, size = 0x6000, scoped, tag = 'output window, operand 0']
    %7 = vsyncpa [#allocation3], 0
    %s8 = scalar_lea.sflag [#allocation3], 1
    %9 = vsyncpa %s8, 0
    %10 = vsyncpa [#allocation6], 0
    %s11 = scalar_lea.sflag [#allocation6], 1
    %12 = vsyncpa %s11, 0
    %13 = vsyncpa [#allocation4], 0
    %s14 = scalar_lea.sflag [#allocation4], 1
    %15 = vsyncpa %s14, 0
    loop: start=0, step=1, limit=4
    $region2: #{tpu_custom_call.1} parent=1 // loop_pre_header
      _
    $region3: #{tpu_custom_call.1} parent=1 // loop_header
      %s17 = sphi 0, %s21
      %p18 = scmp.ge.s32.totalorder %s17, 4
      %s24 = sphi 0, %s43
      %s25 = sphi 0, %s39
      %s26 = sphi 0, %s35
      %s27 = sphi 0, %s24
      %s28 = sphi 0, %s25
      %s29 = sphi 0, %s26
      %s30 = sphi 0, %s27
      %s31 = sphi 0, %s28
      %s32 = sphi 0, %s29
      %s54 = sphi 0, %s56
      %s57 = sphi 0, %s54
      %s58 = sphi 0, %s57
      %s74 = sphi 0, %s58
      %s88 = sphi 0, %s90
      %s91 = sphi 0, %s88
      %s92 = sphi 0, %s91
      %s108 = sphi 0, %s92
      %s116 = sphi 0, %s118
      %s119 = sphi 0, %s116
      %s120 = sphi 0, %s119
      %s136 = sphi 0, %s120
    $region4: #{tpu_custom_call.1} parent=1 // loop_header_branch
      %20 = sbr.rel (%p18) target = $region8
    $region5: #{tpu_custom_call.1} parent=1 // loop_body
      %s22 = ssub.s32 %s17, 1
      %s23 = ssub.s32 %s17, 2
      %s33 = sadd.s32 1, %s26
      %p34 = scmp.ge.s32.totalorder %s33, 1
      %s35 = scalar_select %p34, 0, %s33
      %s36 = sadd.s32 1, %s25
      %s37 = scalar_select %p34, %s36, %s25
      %p38 = scmp.ge.s32.totalorder %s37, 1
      %s39 = scalar_select %p38, 0, %s37
      %s40 = sadd.s32 1, %s24
      %s41 = scalar_select %p38, %s40, %s24
      %p42 = scmp.ge.s32.totalorder %s41, 2
      %s43 = scalar_select %p42, 0, %s41
      %s44 = sadd.s32 %s24, %s26
      %p45 = scmp.lt.s32.totalorder %s44, 0
      %s46 = scalar_select %p45, %s44, 0
      %s47 = sadd.s32 %s43, %s35
      %p48 = scmp.lt.s32.totalorder %s47, 0
      %s49 = scalar_select %p48, %s47, 0
      %s50 = ssub.s32 %s25, %s39
      %s51 = ssub.s32 %s46, %s49
      %s52 = sor.u32 %s50, %s51
      %p53 = scmp.eq.s32.totalorder %s52, 0
      %s55 = sadd.s32 %s54, 1
      %s56 = scalar_select %p53, %s54, %s55
      %p59 = pneg %p53
      %p60 = scmp.eq.s32.totalorder %s17, 1
      %p61 = por %p59, %p60
      %p62 = scmp.ne.s32.totalorder %s54, %s57
      %p63 = scmp.eq.s32.totalorder %s17, 0
      %p64 = por %p62, %p63
      %p65 = scmp.ne.s32.totalorder %s54, %s57
      %p66 = scmp.eq.s32.totalorder %s22, 1
      %p67 = por %p65, %p66
      %p68 = scmp.ne.s32.totalorder %s57, %s58
      %p69 = scmp.eq.s32.totalorder %s22, 0
      %p70 = por %p68, %p69
      %p71 = scmp.ne.s32.totalorder %s57, %s58
      %p72 = scmp.eq.s32.totalorder %s23, 1
      %p73 = por %p71, %p72
      %p75 = scmp.ne.s32.totalorder %s58, %s74
      %p76 = scmp.eq.s32.totalorder %s23, 0
      %p77 = por %p75, %p76
      %s78 = sadd.s32 %s24, %s26
      %p79 = scmp.lt.s32.totalorder %s78, 0
      %s80 = scalar_select %p79, %s78, 0
      %s81 = sadd.s32 %s43, %s35
      %p82 = scmp.lt.s32.totalorder %s81, 0
      %s83 = scalar_select %p82, %s81, 0
      %s84 = ssub.s32 %s25, %s39
      %s85 = ssub.s32 %s80, %s83
      %s86 = sor.u32 %s84, %s85
      %p87 = scmp.eq.s32.totalorder %s86, 0
      %s89 = sadd.s32 %s88, 1
      %s90 = scalar_select %p87, %s88, %s89
      %p93 = pneg %p87
      %p94 = scmp.eq.s32.totalorder %s17, 1
      %p95 = por %p93, %p94
      %p96 = scmp.ne.s32.totalorder %s88, %s91
      %p97 = scmp.eq.s32.totalorder %s17, 0
      %p98 = por %p96, %p97
      %p99 = scmp.ne.s32.totalorder %s88, %s91
      %p100 = scmp.eq.s32.totalorder %s22, 1
      %p101 = por %p99, %p100
      %p102 = scmp.ne.s32.totalorder %s91, %s92
      %p103 = scmp.eq.s32.totalorder %s22, 0
      %p104 = por %p102, %p103
      %p105 = scmp.ne.s32.totalorder %s91, %s92
      %p106 = scmp.eq.s32.totalorder %s23, 1
      %p107 = por %p105, %p106
      %p109 = scmp.ne.s32.totalorder %s92, %s108
      %p110 = scmp.eq.s32.totalorder %s23, 0
      %p111 = por %p109, %p110
      %s112 = ssub.s32 %s24, %s43
      %s113 = ssub.s32 %s25, %s39
      %s114 = sor.u32 %s112, %s113
      %p115 = scmp.eq.s32.totalorder %s114, 0
      %s117 = sadd.s32 %s116, 1
      %s118 = scalar_select %p115, %s116, %s117
      %p121 = pneg %p115
      %p122 = scmp.eq.s32.totalorder %s17, 1
      %p123 = por %p121, %p122
      %p124 = scmp.ne.s32.totalorder %s116, %s119
      %p125 = scmp.eq.s32.totalorder %s17, 0
      %p126 = por %p124, %p125
      %p127 = scmp.ne.s32.totalorder %s116, %s119
      %p128 = scmp.eq.s32.totalorder %s22, 1
      %p129 = por %p127, %p128
      %p130 = scmp.ne.s32.totalorder %s119, %s120
      %p131 = scmp.eq.s32.totalorder %s22, 0
      %p132 = por %p130, %p131
      %p133 = scmp.ne.s32.totalorder %s119, %s120
      %p134 = scmp.eq.s32.totalorder %s23, 1
      %p135 = por %p133, %p134
      %p137 = scmp.ne.s32.totalorder %s120, %s136
      %p138 = scmp.eq.s32.totalorder %s23, 0
      %p139 = por %p137, %p138
      %p140 = scmp.le.s32.totalorder 1, %s17
      %p141 = scmp.lt.s32.totalorder %s17, 3
      %p142 = pnand %p140, %p141
      %p143 = pneg %p142
      // Predicated region
      $region9: #{tpu_custom_call.1} parent=5 // pred_check
        _
      $region10: #{tpu_custom_call.1} parent=5 // pred_check_branch
        %145 = sbr.rel (%p142) target = $region12
      $region11: #{tpu_custom_call.1} parent=5 // pred_region
        %s146 = ssub.s32 %s17, 1
      $region12: #{tpu_custom_call.1} parent=5 // pred_fallthru
        _
      %p147 = scmp.lt.s32.totalorder %s17, 2
      // Predicated region
      $region13: #{tpu_custom_call.1} parent=5 // pred_check
        %p148 = pneg %p147
      $region14: #{tpu_custom_call.1} parent=5 // pred_check_branch
        %150 = sbr.rel (%p148) target = $region16
      $region15: #{tpu_custom_call.1} parent=5 // pred_region
        // Predicated region
        $region17: #{tpu_custom_call.1} parent=15 // pred_check
          %p151 = pneg %p64
        $region18: #{tpu_custom_call.1} parent=15 // pred_check_branch
          %153 = sbr.rel (%p151) target = $region20
        $region19: #{tpu_custom_call.1} parent=15 // pred_region
          %s154 = sand.u32 %s54, 1
          %s155 = scalar_lea.sflag [#allocation3], %s154
          %s156 = sand.u32 %s54, 1
          %s157 = smul.addr %s156, 16
          %s158 = scalar_lea.vmem [#allocation2], %s157
          %s159 = sadd.s32 %s24, %s26
          %p160 = scmp.lt.s32.totalorder %s159, 0
          %s161 = scalar_select %p160, %s159, 0
          %s162 = smul.u32 8, %s25
          %s164 = ssub.s32 256, 256
          %165 = vsyncadd %s155, %s164
          %s166 = sadd.s32 %s161, %s162
          %s167 = smul.addr %s166, 32
          %s168 = scalar_lea.hbm %s0, %s167
          %s169 = sshll.u32 %s158, 4
          %s170 = int_to_ptr.vmem [resolvable:$true] %s169
          %175 = dma.hbm_to_vmem [thread:$0]  %s168, 256, %s170, %s155, 32, 32, 2
        $region20: #{tpu_custom_call.1} parent=15 // pred_fallthru
          _
        // Predicated region
        $region21: #{tpu_custom_call.1} parent=15 // pred_check
          %p176 = pneg %p98
        $region22: #{tpu_custom_call.1} parent=15 // pred_check_branch
          %178 = sbr.rel (%p176) target = $region24
        $region23: #{tpu_custom_call.1} parent=15 // pred_region
          %s179 = sand.u32 %s88, 1
          %s180 = scalar_lea.sflag [#allocation6], %s179
          %s181 = sand.u32 %s88, 1
          %s182 = smul.addr %s181, 16
          %s183 = scalar_lea.vmem [#allocation5], %s182
          %s184 = sadd.s32 %s24, %s26
          %p185 = scmp.lt.s32.totalorder %s184, 0
          %s186 = scalar_select %p185, %s184, 0
          %s187 = smul.u32 8, %s25
          %s189 = ssub.s32 256, 256
          %190 = vsyncadd %s180, %s189
          %s191 = sadd.s32 %s186, %s187
          %s192 = smul.addr %s191, 32
          %s193 = scalar_lea.hbm %s1, %s192
          %s194 = sshll.u32 %s183, 4
          %s195 = int_to_ptr.vmem [resolvable:$true] %s194
          %200 = dma.hbm_to_vmem [thread:$0]  %s193, 256, %s195, %s180, 32, 32, 2
        $region24: #{tpu_custom_call.1} parent=15 // pred_fallthru
          _
      $region16: #{tpu_custom_call.1} parent=5 // pred_fallthru
        _
      %p201 = scmp.le.s32.totalorder 1, %s17
      %p202 = scmp.lt.s32.totalorder %s17, 3
      %p203 = pnand %p201, %p202
      %p204 = pneg %p203
      // Predicated region
      $region25: #{tpu_custom_call.1} parent=5 // pred_check
        _
      $region26: #{tpu_custom_call.1} parent=5 // pred_check_branch
        %206 = sbr.rel (%p203) target = $region28
      $region27: #{tpu_custom_call.1} parent=5 // pred_region
        %s207 = ssub.s32 %s17, 1
        %s208 = sand.u32 %s57, 1
        %s209 = scalar_lea.sflag [#allocation3], %s208
        %s210 = sand.u32 %s57, 1
        %s211 = smul.addr %s210, 16
        %s212 = scalar_lea.vmem [#allocation2], %s211
        // Predicated region
        $region29: #{tpu_custom_call.1} parent=27 // pred_check
          %p213 = pneg %p70
        $region30: #{tpu_custom_call.1} parent=27 // pred_check_branch
          %215 = sbr.rel (%p213) target = $region32
        $region31: #{tpu_custom_call.1} parent=27 // pred_region
          %216 = dma.done %s209, 256
        $region32: #{tpu_custom_call.1} parent=27 // pred_fallthru
          _
        %s217 = sand.u32 %s91, 1
        %s218 = scalar_lea.sflag [#allocation6], %s217
        %s219 = sand.u32 %s91, 1
        %s220 = smul.addr %s219, 16
        %s221 = scalar_lea.vmem [#allocation5], %s220
        // Predicated region
        $region33: #{tpu_custom_call.1} parent=27 // pred_check
          %p222 = pneg %p104
        $region34: #{tpu_custom_call.1} parent=27 // pred_check_branch
          %224 = sbr.rel (%p222) target = $region36
        $region35: #{tpu_custom_call.1} parent=27 // pred_region
          %225 = dma.done %s218, 256
        $region36: #{tpu_custom_call.1} parent=27 // pred_fallthru
          _
        %s226 = sand.u32 %s57, 1
        %s227 = scalar_lea.sflag [#allocation3], %s226
        %s228 = sand.u32 %s57, 1
        %s229 = smul.addr %s228, 16
        %s230 = scalar_lea.vmem [#allocation2], %s229
        %p231 = pneg %p70
        %p232 = pneg %p67
        %s233 = sand.u32 %s91, 1
        %s234 = scalar_lea.sflag [#allocation6], %s233
        %s235 = sand.u32 %s91, 1
        %s236 = smul.addr %s235, 16
        %s237 = scalar_lea.vmem [#allocation5], %s236
        %p238 = pneg %p104
        %p239 = pneg %p101
        %p240 = pneg %p132
        %p241 = pneg %p129
        %s242 = sand.u32 %s119, 1
        %s243 = scalar_lea.sflag [#allocation4], %s242
        %s244 = sand.u32 %s119, 1
        %s245 = smul.addr %s244, 24
        %s246 = scalar_lea.vmem [#allocation7], %s245
        %s247 = sadd.s32 %s27, %s29
        %p248 = scmp.lt.s32.totalorder %s247, 0
        %s249 = scalar_select %p248, %s247, 0
        %s250 = smul.u32 8, %s28
        %s251 = sadd.s32 %s27, %s29
        %p252 = scmp.lt.s32.totalorder %s251, 0
        %s253 = scalar_select %p252, %s251, 0
        %s254 = smul.u32 8, %s28
        %v255 = vld [vmem:[%s212] sm:$0x3]
        %v256 = vld [vmem:[%s212 + $0x2] sm:$0x3]
        %v257 = vld [vmem:[%s212 + $0x4] sm:$0x3]
        %v258 = vld [vmem:[%s212 + $0x6] sm:$0x3]
        %v259 = vld [vmem:[%s212 + $0x8] sm:$0x3]
        %v260 = vld [vmem:[%s212 + $0xa] sm:$0x3]
        %v261 = vld [vmem:[%s212 + $0xc] sm:$0x3]
        %v262 = vld [vmem:[%s212 + $0xe] sm:$0x3]
        %v263 = vld [vmem:[%s221] sm:$0x3]
        %v264 = vld [vmem:[%s221 + $0x2] sm:$0x3]
        %v265 = vld [vmem:[%s221 + $0x4] sm:$0x3]
        %v266 = vld [vmem:[%s221 + $0x6] sm:$0x3]
        %v267 = vld [vmem:[%s221 + $0x8] sm:$0x3]
        %v268 = vld [vmem:[%s221 + $0xa] sm:$0x3]
        %v269 = vld [vmem:[%s221 + $0xc] sm:$0x3]
        %v270 = vld [vmem:[%s221 + $0xe] sm:$0x3]
        %v271 = vmul.f32 %v255, 0.5
        %v272 = vmul.f32 %v256, 0.5
        %v273 = vmul.f32 %v257, 0.5
        %v274 = vmul.f32 %v258, 0.5
        %v275 = vmul.f32 %v259, 0.5
        %v276 = vmul.f32 %v260, 0.5
        %v277 = vmul.f32 %v261, 0.5
        %v278 = vmul.f32 %v262, 0.5
        %v279 = vtanh.pop %v271
        %v280 = vtanh.pop %v272
        %v281 = vtanh.pop %v273
        %v282 = vtanh.pop %v274
        %v283 = vtanh.pop %v275
        %v284 = vtanh.pop %v276
        %v285 = vtanh.pop %v277
        %v286 = vtanh.pop %v278
        %v287 = vlaneseq
        %v288 = vshrl.u32 %v287, 7
        %v289 = vlaneseq
        %v290 = vand.u32 %v289, 127
        %s291 = sadd.s32 %s27, %s29
        %s292 = smul.u32 %s291, 256
        %v293 = vmul.u32 %v288, 128
        %v294 = vadd.s32 %v293, %v290
        %s295 = ssub.s32 256, %s292
        %v296 = vstv %s295
        %vm297 = vcmp.lt.s32.totalorder %v294, %v296
        %v298 = vsel %vm297, %v279, 0.0
        %v299 = vsel %vm297, %v280, 0.0
        %v300 = vsel %vm297, %v281, 0.0
        %v301 = vsel %vm297, %v282, 0.0
        %v302 = vsel %vm297, %v283, 0.0
        %v303 = vsel %vm297, %v284, 0.0
        %v304 = vsel %vm297, %v285, 0.0
        %v305 = vsel %vm297, %v286, 0.0
        %v306 = vsel %vm297, %v263, 0.0
        %v307 = vsel %vm297, %v264, 0.0
        %v308 = vsel %vm297, %v265, 0.0
        %v309 = vsel %vm297, %v266, 0.0
        %v310 = vsel %vm297, %v267, 0.0
        %v311 = vsel %vm297, %v268, 0.0
        %v312 = vsel %vm297, %v269, 0.0
        %v313 = vsel %vm297, %v270, 0.0
        %v314 = vmul.f32 %v298, %v306
        %v315 = vmul.f32 %v299, %v307
        %v316 = vmul.f32 %v300, %v308
        %v317 = vmul.f32 %v301, %v309
        %v318 = vmul.f32 %v302, %v310
        %v319 = vmul.f32 %v303, %v311
        %v320 = vmul.f32 %v304, %v312
        %v321 = vmul.f32 %v305, %v313
        %vm322 = vcmask 1041408
        %v323 = vsel %vm322, %v314, 0.0
        %v324 = vrot.slane %v323, 4
        %v325 = vadd.f32 %v323, %v324
        %v326 = vrot.slane %v325, 2
        %v327 = vadd.f32 %v325, %v326
        %v328 = vrot.slane %v327, 1
        %v329 = vadd.f32 %v327, %v328
        %v330 = vsel %vm322, %v315, 0.0
        %v331 = vrot.slane %v330, 4
        %v332 = vadd.f32 %v330, %v331
        %v333 = vrot.slane %v332, 2
        %v334 = vadd.f32 %v332, %v333
        %v335 = vrot.slane %v334, 1
        %v336 = vadd.f32 %v334, %v335
        %v337 = vsel %vm322, %v316, 0.0
        %v338 = vrot.slane %v337, 4
        %v339 = vadd.f32 %v337, %v338
        %v340 = vrot.slane %v339, 2
        %v341 = vadd.f32 %v339, %v340
        %v342 = vrot.slane %v341, 1
        %v343 = vadd.f32 %v341, %v342
        %v344 = vsel %vm322, %v317, 0.0
        %v345 = vrot.slane %v344, 4
        %v346 = vadd.f32 %v344, %v345
        %v347 = vrot.slane %v346, 2
        %v348 = vadd.f32 %v346, %v347
        %v349 = vrot.slane %v348, 1
        %v350 = vadd.f32 %v348, %v349
        %v351 = vsel %vm322, %v318, 0.0
        %v352 = vrot.slane %v351, 4
        %v353 = vadd.f32 %v351, %v352
        %v354 = vrot.slane %v353, 2
        %v355 = vadd.f32 %v353, %v354
        %v356 = vrot.slane %v355, 1
        %v357 = vadd.f32 %v355, %v356
        %v358 = vsel %vm322, %v319, 0.0
        %v359 = vrot.slane %v358, 4
        %v360 = vadd.f32 %v358, %v359
        %v361 = vrot.slane %v360, 2
        %v362 = vadd.f32 %v360, %v361
        %v363 = vrot.slane %v362, 1
        %v364 = vadd.f32 %v362, %v363
        %v365 = vsel %vm322, %v320, 0.0
        %v366 = vrot.slane %v365, 4
        %v367 = vadd.f32 %v365, %v366
        %v368 = vrot.slane %v367, 2
        %v369 = vadd.f32 %v367, %v368
        %v370 = vrot.slane %v369, 1
        %v371 = vadd.f32 %v369, %v370
        %v372 = vsel %vm322, %v321, 0.0
        %v373 = vrot.slane %v372, 4
        %v374 = vadd.f32 %v372, %v373
        %v375 = vrot.slane %v374, 2
        %v376 = vadd.f32 %v374, %v375
        %v377 = vrot.slane %v376, 1
        %v378 = vadd.f32 %v376, %v377
        %v379 = vsel %vm322, %v298, 0.0
        %v380 = vrot.slane %v379, 4
        %v381 = vadd.f32 %v379, %v380
        %v382 = vrot.slane %v381, 2
        %v383 = vadd.f32 %v381, %v382
        %v384 = vrot.slane %v383, 1
        %v385 = vadd.f32 %v383, %v384
        %v386 = vsel %vm322, %v299, 0.0
        %v387 = vrot.slane %v386, 4
        %v388 = vadd.f32 %v386, %v387
        %v389 = vrot.slane %v388, 2
        %v390 = vadd.f32 %v388, %v389
        %v391 = vrot.slane %v390, 1
        %v392 = vadd.f32 %v390, %v391
        %v393 = vsel %vm322, %v300, 0.0
        %v394 = vrot.slane %v393, 4
        %v395 = vadd.f32 %v393, %v394
        %v396 = vrot.slane %v395, 2
        %v397 = vadd.f32 %v395, %v396
        %v398 = vrot.slane %v397, 1
        %v399 = vadd.f32 %v397, %v398
        %v400 = vsel %vm322, %v301, 0.0
        %v401 = vrot.slane %v400, 4
        %v402 = vadd.f32 %v400, %v401
        %v403 = vrot.slane %v402, 2
        %v404 = vadd.f32 %v402, %v403
        %v405 = vrot.slane %v404, 1
        %v406 = vadd.f32 %v404, %v405
        %v407 = vsel %vm322, %v302, 0.0
        %v408 = vrot.slane %v407, 4
        %v409 = vadd.f32 %v407, %v408
        %v410 = vrot.slane %v409, 2
        %v411 = vadd.f32 %v409, %v410
        %v412 = vrot.slane %v411, 1
        %v413 = vadd.f32 %v411, %v412
        %v414 = vsel %vm322, %v303, 0.0
        %v415 = vrot.slane %v414, 4
        %v416 = vadd.f32 %v414, %v415
        %v417 = vrot.slane %v416, 2
        %v418 = vadd.f32 %v416, %v417
        %v419 = vrot.slane %v418, 1
        %v420 = vadd.f32 %v418, %v419
        %v421 = vsel %vm322, %v304, 0.0
        %v422 = vrot.slane %v421, 4
        %v423 = vadd.f32 %v421, %v422
        %v424 = vrot.slane %v423, 2
        %v425 = vadd.f32 %v423, %v424
        %v426 = vrot.slane %v425, 1
        %v427 = vadd.f32 %v425, %v426
        %v428 = vsel %vm322, %v305, 0.0
        %v429 = vrot.slane %v428, 4
        %v430 = vadd.f32 %v428, %v429
        %v431 = vrot.slane %v430, 2
        %v432 = vadd.f32 %v430, %v431
        %v433 = vrot.slane %v432, 1
        %v434 = vadd.f32 %v432, %v433
        %v435 = vsel %vm322, %v306, 0.0
        %v436 = vrot.slane %v435, 4
        %v437 = vadd.f32 %v435, %v436
        %v438 = vrot.slane %v437, 2
        %v439 = vadd.f32 %v437, %v438
        %v440 = vrot.slane %v439, 1
        %v441 = vadd.f32 %v439, %v440
        %v442 = vsel %vm322, %v307, 0.0
        %v443 = vrot.slane %v442, 4
        %v444 = vadd.f32 %v442, %v443
        %v445 = vrot.slane %v444, 2
        %v446 = vadd.f32 %v444, %v445
        %v447 = vrot.slane %v446, 1
        %v448 = vadd.f32 %v446, %v447
        %v449 = vsel %vm322, %v308, 0.0
        %v450 = vrot.slane %v449, 4
        %v451 = vadd.f32 %v449, %v450
        %v452 = vrot.slane %v451, 2
        %v453 = vadd.f32 %v451, %v452
        %v454 = vrot.slane %v453, 1
        %v455 = vadd.f32 %v453, %v454
        %v456 = vsel %vm322, %v309, 0.0
        %v457 = vrot.slane %v456, 4
        %v458 = vadd.f32 %v456, %v457
        %v459 = vrot.slane %v458, 2
        %v460 = vadd.f32 %v458, %v459
        %v461 = vrot.slane %v460, 1
        %v462 = vadd.f32 %v460, %v461
        %v463 = vsel %vm322, %v310, 0.0
        %v464 = vrot.slane %v463, 4
        %v465 = vadd.f32 %v463, %v464
        %v466 = vrot.slane %v465, 2
        %v467 = vadd.f32 %v465, %v466
        %v468 = vrot.slane %v467, 1
        %v469 = vadd.f32 %v467, %v468
        %v470 = vsel %vm322, %v311, 0.0
        %v471 = vrot.slane %v470, 4
        %v472 = vadd.f32 %v470, %v471
        %v473 = vrot.slane %v472, 2
        %v474 = vadd.f32 %v472, %v473
        %v475 = vrot.slane %v474, 1
        %v476 = vadd.f32 %v474, %v475
        %v477 = vsel %vm322, %v312, 0.0
        %v478 = vrot.slane %v477, 4
        %v479 = vadd.f32 %v477, %v478
        %v480 = vrot.slane %v479, 2
        %v481 = vadd.f32 %v479, %v480
        %v482 = vrot.slane %v481, 1
        %v483 = vadd.f32 %v481, %v482
        %v484 = vsel %vm322, %v313, 0.0
        %v485 = vrot.slane %v484, 4
        %v486 = vadd.f32 %v484, %v485
        %v487 = vrot.slane %v486, 2
        %v488 = vadd.f32 %v486, %v487
        %v489 = vrot.slane %v488, 1
        %v490 = vadd.f32 %v488, %v489
        %p491 = scmp.eq.s32.totalorder %s29, 0
        // Predicated region
        $region37: #{tpu_custom_call.1} parent=27 // pred_check
          %p492 = pneg %p491
        $region38: #{tpu_custom_call.1} parent=27 // pred_check_branch
          %494 = sbr.rel (%p492) target = $region40
        $region39: #{tpu_custom_call.1} parent=27 // pred_region
          %vm503 = vcmask 1041409
          %v504 = vsel %vm503, %v336, %v329
          %vm505 = vcmask 1042434
          %v506 = vsel %vm505, %v343, %v504
          %vm507 = vcmask 1043459
          %v508 = vsel %vm507, %v350, %v506
          %vm509 = vcmask 1044484
          %v510 = vsel %vm509, %v357, %v508
          %vm511 = vcmask 1045509
          %v512 = vsel %vm511, %v364, %v510
          %vm513 = vcmask 1046534
          %v514 = vsel %vm513, %v371, %v512
          %vm515 = vcmask 1047559
          %v516 = vsel %vm515, %v378, %v514
          %518 = vst [vmem:[%s246] sm:$0xff] %v516
          %v527 = vsel %vm503, %v392, %v385
          %v528 = vsel %vm505, %v399, %v527
          %v529 = vsel %vm507, %v406, %v528
          %v530 = vsel %vm509, %v413, %v529
          %v531 = vsel %vm511, %v420, %v530
          %v532 = vsel %vm513, %v427, %v531
          %v533 = vsel %vm515, %v434, %v532
          %s535 = scalar_lea.vmem %s246, 8 [#allocation7]
          %536 = vst [vmem:[%s535] sm:$0xff] %v533
          %v545 = vsel %vm503, %v448, %v441
          %v546 = vsel %vm505, %v455, %v545
          %v547 = vsel %vm507, %v462, %v546
          %v548 = vsel %vm509, %v469, %v547
          %v549 = vsel %vm511, %v476, %v548
          %v550 = vsel %vm513, %v483, %v549
          %v551 = vsel %vm515, %v490, %v550
          %s553 = scalar_lea.vmem %s246, 16 [#allocation7]
          %554 = vst [vmem:[%s553] sm:$0xff] %v551
        $region40: #{tpu_custom_call.1} parent=27 // pred_fallthru
          _
        %p555 = scmp.ne.s32.totalorder %s29, 0
        // Predicated region
        $region41: #{tpu_custom_call.1} parent=27 // pred_check
          %p556 = pneg %p555
        $region42: #{tpu_custom_call.1} parent=27 // pred_check_branch
          %558 = sbr.rel (%p556) target = $region44
        $region43: #{tpu_custom_call.1} parent=27 // pred_region
          %v559 = vld [vmem:[%s246] sm:$0xff]
          %vm568 = vcmask 1041409
          %v569 = vsel %vm568, %v336, %v329
          %vm570 = vcmask 1042434
          %v571 = vsel %vm570, %v343, %v569
          %vm572 = vcmask 1043459
          %v573 = vsel %vm572, %v350, %v571
          %vm574 = vcmask 1044484
          %v575 = vsel %vm574, %v357, %v573
          %vm576 = vcmask 1045509
          %v577 = vsel %vm576, %v364, %v575
          %vm578 = vcmask 1046534
          %v579 = vsel %vm578, %v371, %v577
          %vm580 = vcmask 1047559
          %v581 = vsel %vm580, %v378, %v579
          %v583 = vadd.f32 %v559, %v581
          %584 = vst [vmem:[%s246] sm:$0xff] %v583
          %s585 = scalar_lea.vmem %s246, 8 [#allocation7]
          %v586 = vld [vmem:[%s585] sm:$0xff]
          %v595 = vsel %vm568, %v392, %v385
          %v596 = vsel %vm570, %v399, %v595
          %v597 = vsel %vm572, %v406, %v596
          %v598 = vsel %vm574, %v413, %v597
          %v599 = vsel %vm576, %v420, %v598
          %v600 = vsel %vm578, %v427, %v599
          %v601 = vsel %vm580, %v434, %v600
          %v603 = vadd.f32 %v586, %v601
          %604 = vst [vmem:[%s585] sm:$0xff] %v603
          %s605 = scalar_lea.vmem %s246, 16 [#allocation7]
          %v606 = vld [vmem:[%s605] sm:$0xff]
          %v615 = vsel %vm568, %v448, %v441
          %v616 = vsel %vm570, %v455, %v615
          %v617 = vsel %vm572, %v462, %v616
          %v618 = vsel %vm574, %v469, %v617
          %v619 = vsel %vm576, %v476, %v618
          %v620 = vsel %vm578, %v483, %v619
          %v621 = vsel %vm580, %v490, %v620
          %v623 = vadd.f32 %v606, %v621
          %624 = vst [vmem:[%s605] sm:$0xff] %v623
        $region44: #{tpu_custom_call.1} parent=27 // pred_fallthru
          _
        %s625 = sand.u32 %s119, 1
        %s626 = scalar_lea.sflag [#allocation4], %s625
        %s627 = sand.u32 %s119, 1
        %s628 = smul.addr %s627, 24
        %s629 = scalar_lea.vmem [#allocation7], %s628
        // Predicated region
        $region45: #{tpu_custom_call.1} parent=27 // pred_check
          %p630 = pneg %p129
        $region46: #{tpu_custom_call.1} parent=27 // pred_check_branch
          %632 = sbr.rel (%p630) target = $region48
        $region47: #{tpu_custom_call.1} parent=27 // pred_region
          %s634 = ssub.s32 384, 384
          %635 = vsyncadd %s626, %s634
          %s636 = smul.addr %s27, 3
          %s637 = sadd.s32 %s28, %s636
          %s638 = smul.addr %s637, 128
          %s639 = scalar_lea.hbm %s2, %s638
          %s640 = sshll.u32 %s629, 4
          %s641 = int_to_ptr.vmem [resolvable:$true] %s640
          %646 = dma.vmem_to_hbm [thread:$0]  %s641, 384, %s639, %s626, 128, 128, 8
        $region48: #{tpu_custom_call.1} parent=27 // pred_fallthru
          _
      $region28: #{tpu_custom_call.1} parent=5 // pred_fallthru
        _
      %p647 = scmp.le.s32.totalorder 2, %s17
      // Predicated region
      $region49: #{tpu_custom_call.1} parent=5 // pred_check
        %p648 = pneg %p647
      $region50: #{tpu_custom_call.1} parent=5 // pred_check_branch
        %650 = sbr.rel (%p648) target = $region52
      $region51: #{tpu_custom_call.1} parent=5 // pred_region
        %s651 = ssub.s32 %s17, 2
        // Predicated region
        $region53: #{tpu_custom_call.1} parent=51 // pred_check
          %p652 = pneg %p135
        $region54: #{tpu_custom_call.1} parent=51 // pred_check_branch
          %654 = sbr.rel (%p652) target = $region56
        $region55: #{tpu_custom_call.1} parent=51 // pred_region
          %s655 = sand.u32 %s120, 1
          %s656 = scalar_lea.sflag [#allocation4], %s655
          %s657 = sand.u32 %s120, 1
          %s658 = smul.addr %s657, 24
          %s659 = scalar_lea.vmem [#allocation7], %s658
          %660 = dma.done %s656, 384
        $region56: #{tpu_custom_call.1} parent=51 // pred_fallthru
          _
      $region52: #{tpu_custom_call.1} parent=5 // pred_fallthru
        _
    $region6: #{tpu_custom_call.1} parent=1 // loop_footer
      %s21 = sadd.s32 1, %s17
    $region7: #{tpu_custom_call.1} parent=1 // loop_footer_branch
      %16 = sbr.rel target = $region3
    $region8: #{tpu_custom_call.1} parent=1 // loop_exit
      _
    %661 = vsyncpa [#allocation3], 1
    %s662 = scalar_lea.sflag [#allocation3], 1
    %663 = vsyncpa %s662, 1
    %664 = vsyncpa [#allocation6], 1
    %s665 = scalar_lea.sflag [#allocation6], 1
    %666 = vsyncpa %s665, 1
    %667 = vsyncpa [#allocation4], 1
    %s668 = scalar_lea.sflag [#allocation4], 1
    %669 = vsyncpa %s668, 1

</llo_original>
